<compile_context>
chip_gen: v7x
topology: tpu7x:2x2x1
jax: 0.10.0
libtpu: 0.0.40
codegen_flags: <defaults>
</compile_context>

<pallas_src>
import jax
import jax.numpy as jnp
from jax.experimental import pallas as pl
from jax.experimental.pallas import tpu as pltpu


def _self_attention_kernel(x_ref, w_ref, b_ref, o_ref):
    Bt, N, D_in = x_ref.shape
    Dp = o_ref.shape[-1]                      # padded (lane-dense) atten dim

    # Flatten (Bt, N, D_in) -> (Bt*N, D_in) so all rows feed one MXU matmul.
    x2d = x_ref[...].reshape(Bt * N, D_in)

    # Fused Q/K/V projection: one matmul against the concatenated weights.
    qkv = jnp.dot(x2d, w_ref[...], preferred_element_type=jnp.float32)
    qkv = qkv + b_ref[...]                    # (Bt*N, 3*Dp), bias broadcast

    q = qkv[:, 0 * Dp:1 * Dp].reshape(Bt, N, Dp)
    k = qkv[:, 1 * Dp:2 * Dp].reshape(Bt, N, Dp)
    v = qkv[:, 2 * Dp:3 * Dp].reshape(Bt, N, Dp)

    # scores = Q @ K^T per batch element (contraction on the last dim of both
    # operands — no transpose materialized). No 1/sqrt(d) scaling, per spec.
    s = jnp.einsum("bnd,bmd->bnm", q, k, preferred_element_type=jnp.float32)

    # Numerically-stable softmax; denominator reciprocal on the EUP.
    s = s - jnp.max(s, axis=-1, keepdims=True)
    p = jnp.exp(s)
    p = p * pl.reciprocal(jnp.sum(p, axis=-1, keepdims=True), approx=True)

    # attention_output = A @ V
    out = jnp.einsum("bnm,bmd->bnd", p, v, preferred_element_type=jnp.float32)
    o_ref[...] = out.astype(o_ref.dtype)


def self_attention(x, wq, bq, wk, bk, wv, bv, *, target_rows=256):
    """x: (B, N, D_in); wq/wk/wv: (D_in, D_att); bq/bk/bv: (1, D_att).

    Weights are stored pre-transposed (D_in, D_att) so y = x @ W + b, which is
    equivalent to torch's nn.Linear (x @ W.T + b).
    """
    B, N, D_in = x.shape
    D_att = wq.shape[1]

    # Pad the attention dim up to a multiple of 128 so every store is a full,
    # unmasked 128-lane vst. Zero padding of V columns keeps results exact.
    Dp = pl.cdiv(D_att, 128) * 128
    pad = Dp - D_att

    def pad_cols(a):
        return a if pad == 0 else jnp.pad(a, ((0, 0), (0, pad)))

    w_qkv = jnp.concatenate([pad_cols(wq), pad_cols(wk), pad_cols(wv)], axis=1)
    b_qkv = jnp.concatenate([pad_cols(bq), pad_cols(bk), pad_cols(bv)], axis=1)

    # Batch enough rows per grid step to amortize per-step overhead and feed
    # the MXU; require Bt | B so no partial (garbage-row) blocks exist.
    bt = B
    for cand in range(1, B + 1):
        if B % cand == 0 and cand * N >= target_rows:
            bt = cand
            break
    grid = (B // bt,)

    # Advisory cost hint for XLA's scheduler.
    flops = 2 * B * N * D_in * (3 * Dp) + 4 * B * N * N * Dp
    transcendentals = B * N * N
    bytes_accessed = 4 * (x.size + w_qkv.size + b_qkv.size + B * N * Dp)

    out = pl.pallas_call(
        _self_attention_kernel,
        out_shape=jax.ShapeDtypeStruct((B, N, Dp), x.dtype),
        grid_spec=pltpu.PrefetchScalarGridSpec(
            num_scalar_prefetch=0,
            grid=grid,
            in_specs=[
                pl.BlockSpec((bt, N, D_in), lambda b: (b, 0, 0)),     # x
                pl.BlockSpec((D_in, 3 * Dp), lambda b: (0, 0)),       # W_qkv
                pl.BlockSpec((1, 3 * Dp), lambda b: (0, 0)),          # b_qkv
            ],
            out_specs=pl.BlockSpec((bt, N, Dp), lambda b: (b, 0, 0)),
        ),
        compiler_params=pltpu.CompilerParams(
            dimension_semantics=("parallel",)),
        cost_estimate=pl.CostEstimate(
            flops=flops,
            transcendentals=transcendentals,
            bytes_accessed=bytes_accessed),
    )(x, w_qkv, b_qkv)

    return out[..., :D_att] if pad else out


def _reference(x, wq, bq, wk, bk, wv, bv):
    # Pure-JAX reference mirroring the PyTorch forward.
    q = x @ wq + bq[0]
    k = x @ wk + bk[0]
    v = x @ wv + bv[0]
    s = jnp.einsum("bnd,bmd->bnm", q, k)
    p = jax.nn.softmax(s, axis=-1)
    return jnp.einsum("bnm,bmd->bnd", p, v)


if __name__ == "__main__":
    B, N, D_in, D_att = 2, 8, 32, 32

    key = jax.random.PRNGKey(0)
    kx, kq, kbq, kk, kbk, kv, kbv = jax.random.split(key, 7)

    x = jax.random.normal(kx, (B, N, D_in), dtype=jnp.float32)

    # Deterministic parameter init (nn.Linear-style uniform bound 1/sqrt(D_in)).
    bound = 1.0 / (D_in ** 0.5)
    init = lambda k, shape: jax.random.uniform(k, shape, jnp.float32, -bound, bound)
    wq, bq = init(kq, (D_in, D_att)), init(kbq, (1, D_att))
    wk, bk = init(kk, (D_in, D_att)), init(kbk, (1, D_att))
    wv, bv = init(kv, (D_in, D_att)), init(kbv, (1, D_att))

    out = self_attention(x, wq, bq, wk, bk, wv, bv)
    out = jax.block_until_ready(out)

    ref = _reference(x, wq, bq, wk, bk, wv, bv)
    assert out.shape == (B, N, D_att)
    # Tolerance accommodates the EUP approximate reciprocal used for the
    # softmax denominator (approx=True); genuine bugs give O(1) errors.
    assert jnp.allclose(out, ref, atol=2e-3, rtol=2e-3), "mismatch vs reference"

    print("KERNEL_OK")
</pallas_src>

<mosaic_0001>
module attributes {stable_mosaic.version = 11 : i64} {
  func.func @_self_attention_kernel(%arg0: i32, %arg1: memref<2x8x32xf32, #tpu.memory_space<vmem>>, %arg2: memref<32x384xf32, #tpu.memory_space<vmem>>, %arg3: memref<1x384xf32, #tpu.memory_space<vmem>>, %arg4: memref<2x8x128xf32, #tpu.memory_space<vmem>>) attributes {dimension_semantics = [#tpu.dimension_semantics<parallel>], iteration_bounds = array<i64: 1>, scalar_prefetch = 0 : i64, scratch_operands = 0 : i64, tpu.core_type = #tpu.core_type<tc>, window_params = [{transform_indices = @transform_0, window_bounds = array<i64: 2, 8, 32>}, {pipeline_mode = #tpu.pipeline_mode<synchronous>, transform_indices = @transform_1, window_bounds = array<i64: 32, 384>}, {pipeline_mode = #tpu.pipeline_mode<synchronous>, transform_indices = @transform_2, window_bounds = array<i64: 1, 384>}, {transform_indices = @transform_3, window_bounds = array<i64: 2, 8, 128>}]} {
    %c0 = arith.constant 0 : index
    %c0_0 = arith.constant 0 : index
    %c0_1 = arith.constant 0 : index
    %0 = vector.load %arg1[%c0, %c0_0, %c0_1] : memref<2x8x32xf32, #tpu.memory_space<vmem>>, vector<2x8x32xf32>
    %1 = vector.shape_cast %0 : vector<2x8x32xf32> to vector<16x32xf32>
    %c0_2 = arith.constant 0 : index
    %c0_3 = arith.constant 0 : index
    %2 = vector.load %arg2[%c0_2, %c0_3] : memref<32x384xf32, #tpu.memory_space<vmem>>, vector<32x384xf32>
    %cst = arith.constant dense<0.000000e+00> : vector<16x384xf32>
    %3 = tpu.matmul %1, %2, %cst {dimension_numbers = #tpu.dot_dimension_numbers<[1], [0], [0], [1], [0, 0, 1, 1], [], []>} : vector<16x32xf32>, vector<32x384xf32>, vector<16x384xf32> -> vector<16x384xf32>
    %c0_4 = arith.constant 0 : index
    %c0_5 = arith.constant 0 : index
    %4 = vector.load %arg3[%c0_4, %c0_5] : memref<1x384xf32, #tpu.memory_space<vmem>>, vector<1x384xf32>
    %5 = vector.broadcast %4 : vector<1x384xf32> to vector<16x384xf32>
    %6 = arith.addf %3, %5 : vector<16x384xf32>
    %7 = vector.extract_strided_slice %6 {offsets = [0, 0], sizes = [16, 128], strides = [1, 1]} : vector<16x384xf32> to vector<16x128xf32>
    %8 = vector.shape_cast %7 : vector<16x128xf32> to vector<2x8x128xf32>
    %9 = vector.extract_strided_slice %6 {offsets = [0, 128], sizes = [16, 128], strides = [1, 1]} : vector<16x384xf32> to vector<16x128xf32>
    %10 = vector.shape_cast %9 : vector<16x128xf32> to vector<2x8x128xf32>
    %11 = vector.extract_strided_slice %6 {offsets = [0, 256], sizes = [16, 128], strides = [1, 1]} : vector<16x384xf32> to vector<16x128xf32>
    %12 = vector.shape_cast %11 : vector<16x128xf32> to vector<2x8x128xf32>
    "tpu.trace_start"() <{level = 10 : i32, message = "bnd,bmd->bnm"}> : () -> ()
    %cst_6 = arith.constant dense<0.000000e+00> : vector<2x8x8xf32>
    %13 = tpu.matmul %8, %10, %cst_6 {dimension_numbers = #tpu.dot_dimension_numbers<[2], [2], [1], [1], [0, 0, 0, 1, 1, 1], [0], [0]>} : vector<2x8x128xf32>, vector<2x8x128xf32>, vector<2x8x8xf32> -> vector<2x8x8xf32>
    "tpu.trace_stop"() : () -> ()
    %cst_7 = arith.constant dense<0xFF800000> : vector<2x8xf32>
    %14 = vector.multi_reduction <maximumf>, %13, %cst_7 [2] : vector<2x8x8xf32> to vector<2x8xf32>
    %15 = vector.shape_cast %14 : vector<2x8xf32> to vector<2x8x1xf32>
    %16 = vector.broadcast %15 : vector<2x8x1xf32> to vector<2x8x8xf32>
    %17 = arith.subf %13, %16 : vector<2x8x8xf32>
    %18 = math.exp %17 : vector<2x8x8xf32>
    %cst_8 = arith.constant dense<0.000000e+00> : vector<2x8xf32>
    %19 = vector.multi_reduction <add>, %18, %cst_8 [2] : vector<2x8x8xf32> to vector<2x8xf32>
    %20 = vector.shape_cast %19 : vector<2x8xf32> to vector<2x8x1xf32>
    %21 = tpu.reciprocal %20 {approx = true} : vector<2x8x1xf32> -> vector<2x8x1xf32>
    %22 = vector.broadcast %21 : vector<2x8x1xf32> to vector<2x8x8xf32>
    %23 = arith.mulf %18, %22 : vector<2x8x8xf32>
    "tpu.trace_start"() <{level = 10 : i32, message = "bnm,bmd->bnd"}> : () -> ()
    %cst_9 = arith.constant dense<0.000000e+00> : vector<2x8x128xf32>
    %24 = tpu.matmul %23, %12, %cst_9 {dimension_numbers = #tpu.dot_dimension_numbers<[2], [1], [1], [2], [0, 0, 0, 1, 1, 2], [0], [0]>} : vector<2x8x8xf32>, vector<2x8x128xf32>, vector<2x8x128xf32> -> vector<2x8x128xf32>
    "tpu.trace_stop"() : () -> ()
    %c0_10 = arith.constant 0 : index
    %c0_11 = arith.constant 0 : index
    %c0_12 = arith.constant 0 : index
    %25 = vector.load %arg4[%c0_10, %c0_11, %c0_12] : memref<2x8x128xf32, #tpu.memory_space<vmem>>, vector<2x8x128xf32>
    tpu.vector_store %arg4[%c0_10, %c0_11, %c0_12], %24 {strides = array<i32>} : memref<2x8x128xf32, #tpu.memory_space<vmem>>, vector<2x8x128xf32>,
    return
  }
  func.func @transform_0(%arg0: i32) -> (i32, i32, i32) {
    %c0_i32 = arith.constant 0 : i32
    %c0_i32_0 = arith.constant 0 : i32
    %c0_i32_1 = arith.constant 0 : i32
    return %arg0, %c0_i32, %c0_i32_0 : i32, i32, i32
  }
  func.func @transform_1(%arg0: i32) -> (i32, i32) {
    %c0_i32 = arith.constant 0 : i32
    %c0_i32_0 = arith.constant 0 : i32
    %c0_i32_1 = arith.constant 0 : i32
    return %c0_i32, %c0_i32_0 : i32, i32
  }
  func.func @transform_2(%arg0: i32) -> (i32, i32) {
    %c0_i32 = arith.constant 0 : i32
    %c0_i32_0 = arith.constant 0 : i32
    %c0_i32_1 = arith.constant 0 : i32
    return %c0_i32, %c0_i32_0 : i32, i32
  }
  func.func @transform_3(%arg0: i32) -> (i32, i32, i32) {
    %c0_i32 = arith.constant 0 : i32
    %c0_i32_0 = arith.constant 0 : i32
    %c0_i32_1 = arith.constant 0 : i32
    return %arg0, %c0_i32, %c0_i32_0 : i32, i32, i32
  }
}

</mosaic_0001>

<llo_original>
// kernel: tpu_custom_call.1
$region0: #{tpu_custom_call.1}
  #allocation0 [shape = 'u32[]', space=smem, size = 0x4, offset = 0x4, fixed_abs, tag = 'smem constant byte address 0x4 - core index']
  #allocation1 [shape = 'u32[144,128]{1,0:T(1,128)}', space=vmem, size = 0x12000, scoped, tag = 'internal scratch']
  %s0 = inlined_call_operand.hbm [shape: f32[2,8,32], index: 0, kind: input, shape index: {}]
  %s1 = inlined_call_operand.hbm [shape: f32[32,384], index: 1, kind: input, shape index: {}]
  %s2 = inlined_call_operand.vmem [shape: f32[1,384], index: 2, kind: input, shape index: {}]
  %s3 = inlined_call_operand.hbm [shape: f32[2,8,128], index: 3, kind: output, shape index: {}]
  %s4 = sld [smem:[#allocation0]]
  $region30: #{tpu_custom_call.1} parent=0
    _
  %s6 = ssub.s32 1, %s4
  %s7 = scalar_select 0, %s6, %s4
  $region1: #{tpu_custom_call.1} parent=0
    #allocation2 [shape = 'u8[8192]{0}', space=vmem, size = 0x2000, scoped, tag = 'input window, operand 0, single buffered']
    #allocation3 [shape = 's32[1]{0}', space=sflag, size = 0x4, scoped, tag = 'scoped memory for tpu_custom_call.1']
    #allocation4 [shape = 's32[1]{0}', space=sflag, size = 0x4, scoped, tag = 'scoped memory for tpu_custom_call.1']
    #allocation5 [shape = 'u8[49152]{0}', space=vmem, size = 0xc000, scoped, tag = 'input window, operand 1, single buffered']
    #allocation6 [shape = 's32[1]{0}', space=sflag, size = 0x4, scoped, tag = 'scoped memory for tpu_custom_call.1']
    #allocation7 [shape = 'u8[8192]{0}', space=vmem, size = 0x2000, scoped, tag = 'output window, operand 0, single buffered']
    %8 = vsyncpa [#allocation3], 0
    %9 = vsyncpa [#allocation6], 0
    %10 = vsyncpa [#allocation4], 0
    // Predicated region
    $region2: #{tpu_custom_call.1} parent=1 // pred_check
      _
    $region3: #{tpu_custom_call.1} parent=1 // pred_check_branch
      %12 = sbr.rel (0) target = $region5
    $region4: #{tpu_custom_call.1} parent=1 // pred_region
      %s14 = ssub.s32 256, 256
      %15 = vsyncadd [#allocation3], %s14
      %s16 = sshll.u32 [#allocation2], 4
      %s17 = int_to_ptr.vmem [resolvable:$true] %s16
      %22 = dma.hbm_to_vmem [thread:$0]  %s0, 256, %s17, [#allocation3], 128, 128, 8
    $region5: #{tpu_custom_call.1} parent=1 // pred_fallthru
      _
    // Predicated region
    $region6: #{tpu_custom_call.1} parent=1 // pred_check
      _
    $region7: #{tpu_custom_call.1} parent=1 // pred_check_branch
      %24 = sbr.rel (0) target = $region9
    $region8: #{tpu_custom_call.1} parent=1 // pred_region
      %s26 = ssub.s32 1536, 1536
      %27 = vsyncadd [#allocation6], %s26
      %s28 = sshll.u32 [#allocation5], 4
      %s29 = int_to_ptr.vmem [resolvable:$true] %s28
      %34 = dma.hbm_to_vmem [thread:$0]  %s1, 1536, %s29, [#allocation6], 384, 384, 24
    $region9: #{tpu_custom_call.1} parent=1 // pred_fallthru
      _
    // Predicated region
    $region10: #{tpu_custom_call.1} parent=1 // pred_check
      _
    $region11: #{tpu_custom_call.1} parent=1 // pred_check_branch
      %36 = sbr.rel (0) target = $region13
    $region12: #{tpu_custom_call.1} parent=1 // pred_region
      _
    $region13: #{tpu_custom_call.1} parent=1 // pred_fallthru
      _
    // Predicated region
    $region14: #{tpu_custom_call.1} parent=1 // pred_check
      _
    $region15: #{tpu_custom_call.1} parent=1 // pred_check_branch
      %38 = sbr.rel (0) target = $region17
    $region16: #{tpu_custom_call.1} parent=1 // pred_region
      %39 = dma.done [#allocation3], 256
    $region17: #{tpu_custom_call.1} parent=1 // pred_fallthru
      _
    // Predicated region
    $region18: #{tpu_custom_call.1} parent=1 // pred_check
      _
    $region19: #{tpu_custom_call.1} parent=1 // pred_check_branch
      %41 = sbr.rel (0) target = $region21
    $region20: #{tpu_custom_call.1} parent=1 // pred_region
      %42 = dma.done [#allocation6], 1536
    $region21: #{tpu_custom_call.1} parent=1 // pred_fallthru
      _
    %v43 = vld [vmem:[#allocation2] sm:$0xff]
    %v44 = vld [vmem:[#allocation2 + $0x8] sm:$0xff]
    %v45 = vld [vmem:[#allocation5] sm:$0xff]
    %v46 = vld [vmem:[#allocation5 + $0x8] sm:$0xff]
    %v47 = vld [vmem:[#allocation5 + $0x10] sm:$0xff]
    %v48 = vld [vmem:[#allocation5 + $0x18] sm:$0xff]
    %v49 = vld [vmem:[#allocation5 + $0x20] sm:$0xff]
    %v50 = vld [vmem:[#allocation5 + $0x28] sm:$0xff]
    %v51 = vld [vmem:[#allocation5 + $0x30] sm:$0xff]
    %v52 = vld [vmem:[#allocation5 + $0x38] sm:$0xff]
    %v53 = vld [vmem:[#allocation5 + $0x40] sm:$0xff]
    %v54 = vld [vmem:[#allocation5 + $0x48] sm:$0xff]
    %v55 = vld [vmem:[#allocation5 + $0x50] sm:$0xff]
    %v56 = vld [vmem:[#allocation5 + $0x58] sm:$0xff]
    %v57 = vld [vmem:[%s2] sm:$0x7]
    %v59 = vlaneseq
    %v60 = vshrl.u32 %v59, 7
    %v61 = vsub.s32 0, %v60
    %v62 = vrot.slane %v57, %v61
    %v63 = vlaneseq
    %v64 = vshrl.u32 %v63, 7
    %v65 = vsub.s32 1, %v64
    %v66 = vrot.slane %v57, %v65
    %v67 = vlaneseq
    %v68 = vshrl.u32 %v67, 7
    %v69 = vsub.s32 2, %v68
    %v70 = vrot.slane %v57, %v69
    %vm74 = vcmask 261120
    %v76 = vsel %vm74, %v43, 0
    %v79 = vsel %vm74, %v44, 0
    %81 = vmatprep.subr.mxu0 %v46
    %82 = vmatpush1.msra.mxu0 %v45
    %83 = vmatprep.subr.mxu0 %v49
    %84 = vmatpush1.msra.mxu0 %v48
    %85 = vmatprep.subr.mxu0 %v52
    %86 = vmatpush1.msra.mxu0 %v51
    %87 = vmatprep.subr.mxu0 %v55
    %88 = vmatpush1.msra.mxu0 %v54
    %89 = vmatprep.subr.mxu0 0.0
    %90 = vmatpush1.msra.mxu0 0.0
    %91 = vmatprep.subr.mxu0 0.0
    %92 = vmatpush1.msra.mxu0 0.0
    %93 = vmatprep.subr.mxu0 0.0
    %94 = vmatpush1.msra.mxu0 0.0
    %95 = vmatprep.subr.mxu0 0.0
    %96 = vmatpush1.msra.mxu0 0.0
    %97 = vmatprep.subr.mxu0 0.0
    %98 = vmatpush1.msra.mxu0 0.0
    %99 = vmatprep.subr.mxu0 0.0
    %100 = vmatpush1.msra.mxu0 0.0
    %101 = vmatprep.subr.mxu0 0.0
    %102 = vmatpush1.msra.mxu0 0.0
    %103 = vmatprep.subr.mxu0 0.0
    %104 = vmatpush1.msra.mxu0 0.0
    %105 = vmatprep.subr.mxu0 0.0
    %106 = vmatpush1.msra.mxu0 0.0
    %107 = vmatprep.subr.mxu0 0.0
    %108 = vmatpush1.msra.mxu0 0.0
    %109 = vmatprep.subr.mxu0 0.0
    %110 = vmatpush1.msra.mxu0 0.0
    %111 = vmatprep.subr.mxu0 0.0
    %112 = vmatpush1.msra.mxu0 0.0
    %113 = vmatprep.subr.mxu0 0.0
    %114 = vmatpush1.msra.mxu0 0.0
    %115 = vmatprep.subr.mxu0 0.0
    %116 = vmatpush1.msra.mxu0 0.0
    %117 = vmatprep.subr.mxu0 0.0
    %118 = vmatpush1.msra.mxu0 0.0
    %119 = vmatprep.subr.mxu0 0.0
    %120 = vmatpush1.msra.mxu0 0.0
    %121 = vmatprep.subr.mxu0 0.0
    %122 = vmatpush1.msra.mxu0 0.0
    %123 = vmatprep.subr.mxu0 0.0
    %124 = vmatpush1.msra.mxu0 0.0
    %125 = vmatprep.subr.mxu0 0.0
    %126 = vmatpush1.msra.mxu0 0.0
    %127 = vmatprep.subr.mxu0 0.0
    %128 = vmatpush1.msra.mxu0 0.0
    %129 = vmatprep.subr.mxu0 0.0
    %130 = vmatpush1.msra.mxu0 0.0
    %131 = vmatprep.subr.mxu0 0.0
    %132 = vmatpush1.msra.mxu0 0.0
    %133 = vmatprep.subr.mxu0 0.0
    %134 = vmatpush1.msra.mxu0 0.0
    %135 = vmatprep.subr.mxu0 0.0
    %136 = vmatpush1.msra.mxu0 0.0
    %137 = vmatprep.subr.mxu0 0.0
    %138 = vmatpush1.msra.mxu0 0.0
    %139 = vmatprep.subr.mxu0 0.0
    %140 = vmatpush1.msra.mxu0 0.0
    %141 = vmatprep.subr.mxu0 0.0
    %142 = vmatpush1.msra.mxu0 0.0
    %143 = vmatprep.subr.mxu0 0.0
    %144 = vmatpush1.msra.mxu0 0.0
    %145 = vmatprep.mubr.f32.mxu0 0.0
    %146 = vmatmul.mubr.f32.gmra.mrb[0].mxu0 %v76
    %v147 = vpop.f32.mrb[0].mxu0
    %v148 = vadd.f32 %v62, %v147
    %v149 = vpop.f32.mrb[0].mxu0
    %v150 = vadd.f32 %v66, %v149
    %151 = vmatprep.mubr.f32.mxu0 0.0
    %152 = vmatmul.mubr.f32.gmra.mrb[0].mxu0 %v79
    %v153 = vpop.f32.mrb[0].mxu0
    %v154 = vadd.f32 %v62, %v153
    %v155 = vpop.f32.mrb[0].mxu0
    %v156 = vadd.f32 %v66, %v155
    %157 = vdwg.mxu0
    %158 = vmatprep.subr.mxu0 0.0
    %159 = vmatpush1.msra.mxu0 %v47
    %160 = vmatprep.subr.mxu0 0.0
    %161 = vmatpush1.msra.mxu0 %v50
    %162 = vmatprep.subr.mxu0 0.0
    %163 = vmatpush1.msra.mxu0 %v53
    %164 = vmatprep.subr.mxu0 0.0
    %165 = vmatpush1.msra.mxu0 %v56
    %166 = vmatprep.subr.mxu0 0.0
    %167 = vmatpush1.msra.mxu0 0.0
    %168 = vmatprep.subr.mxu0 0.0
    %169 = vmatpush1.msra.mxu0 0.0
    %170 = vmatprep.subr.mxu0 0.0
    %171 = vmatpush1.msra.mxu0 0.0
    %172 = vmatprep.subr.mxu0 0.0
    %173 = vmatpush1.msra.mxu0 0.0
    %174 = vmatprep.subr.mxu0 0.0
    %175 = vmatpush1.msra.mxu0 0.0
    %176 = vmatprep.subr.mxu0 0.0
    %177 = vmatpush1.msra.mxu0 0.0
    %178 = vmatprep.subr.mxu0 0.0
    %179 = vmatpush1.msra.mxu0 0.0
    %180 = vmatprep.subr.mxu0 0.0
    %181 = vmatpush1.msra.mxu0 0.0
    %182 = vmatprep.subr.mxu0 0.0
    %183 = vmatpush1.msra.mxu0 0.0
    %184 = vmatprep.subr.mxu0 0.0
    %185 = vmatpush1.msra.mxu0 0.0
    %186 = vmatprep.subr.mxu0 0.0
    %187 = vmatpush1.msra.mxu0 0.0
    %188 = vmatprep.subr.mxu0 0.0
    %189 = vmatpush1.msra.mxu0 0.0
    %190 = vmatprep.subr.mxu0 0.0
    %191 = vmatpush1.msra.mxu0 0.0
    %192 = vmatprep.subr.mxu0 0.0
    %193 = vmatpush1.msra.mxu0 0.0
    %194 = vmatprep.subr.mxu0 0.0
    %195 = vmatpush1.msra.mxu0 0.0
    %196 = vmatprep.subr.mxu0 0.0
    %197 = vmatpush1.msra.mxu0 0.0
    %198 = vmatprep.subr.mxu0 0.0
    %199 = vmatpush1.msra.mxu0 0.0
    %200 = vmatprep.subr.mxu0 0.0
    %201 = vmatpush1.msra.mxu0 0.0
    %202 = vmatprep.subr.mxu0 0.0
    %203 = vmatpush1.msra.mxu0 0.0
    %204 = vmatprep.subr.mxu0 0.0
    %205 = vmatpush1.msra.mxu0 0.0
    %206 = vmatprep.subr.mxu0 0.0
    %207 = vmatpush1.msra.mxu0 0.0
    %208 = vmatprep.subr.mxu0 0.0
    %209 = vmatpush1.msra.mxu0 0.0
    %210 = vmatprep.subr.mxu0 0.0
    %211 = vmatpush1.msra.mxu0 0.0
    %212 = vmatprep.subr.mxu0 0.0
    %213 = vmatpush1.msra.mxu0 0.0
    %214 = vmatprep.subr.mxu0 0.0
    %215 = vmatpush1.msra.mxu0 0.0
    %216 = vmatprep.subr.mxu0 0.0
    %217 = vmatpush1.msra.mxu0 0.0
    %218 = vmatprep.subr.mxu0 0.0
    %219 = vmatpush1.msra.mxu0 0.0
    %220 = vmatprep.subr.mxu0 0.0
    %221 = vmatpush1.msra.mxu0 0.0
    %222 = vmatprep.mubr.f32.mxu0 0.0
    %223 = vmatmul.mubr.f32.gmra.mrb[0].mxu0 %v76
    %v224 = vpop.f32.mrb[0].mxu0
    %v225 = vadd.f32 %v70, %v224
    %v226 = vpop.f32.mrb[0].mxu0
    %227 = vmatprep.mubr.f32.mxu0 0.0
    %228 = vmatmul.mubr.f32.gmra.mrb[0].mxu0 %v79
    %v229 = vpop.f32.mrb[0].mxu0
    %v230 = vadd.f32 %v70, %v229
    %v231 = vpop.f32.mrb[0].mxu0
    %232 = vdwg.mxu0
    %233 = vmatprep.subr.mxu0 0.0
    %234 = vmatpush1.xpose.msra.mxu0 %v150
    %235 = vmatprep.subr.mxu0 0.0
    %236 = vmatpush1.xpose.msra.mxu0 0.0
    %237 = vmatprep.subr.mxu0 0.0
    %238 = vmatpush1.xpose.msra.mxu0 0.0
    %239 = vmatprep.subr.mxu0 0.0
    %240 = vmatpush1.xpose.msra.mxu0 0.0
    %241 = vmatprep.subr.mxu0 0.0
    %242 = vmatpush1.xpose.msra.mxu0 0.0
    %243 = vmatprep.subr.mxu0 0.0
    %244 = vmatpush1.xpose.msra.mxu0 0.0
    %245 = vmatprep.subr.mxu0 0.0
    %246 = vmatpush1.xpose.msra.mxu0 0.0
    %247 = vmatprep.subr.mxu0 0.0
    %248 = vmatpush1.xpose.msra.mxu0 0.0
    %249 = vmatprep.subr.mxu0 0.0
    %250 = vmatpush1.xpose.msra.mxu0 0.0
    %251 = vmatprep.subr.mxu0 0.0
    %252 = vmatpush1.xpose.msra.mxu0 0.0
    %253 = vmatprep.subr.mxu0 0.0
    %254 = vmatpush1.xpose.msra.mxu0 0.0
    %255 = vmatprep.subr.mxu0 0.0
    %256 = vmatpush1.xpose.msra.mxu0 0.0
    %257 = vmatprep.subr.mxu0 0.0
    %258 = vmatpush1.xpose.msra.mxu0 0.0
    %259 = vmatprep.subr.mxu0 0.0
    %260 = vmatpush1.xpose.msra.mxu0 0.0
    %261 = vmatprep.subr.mxu0 0.0
    %262 = vmatpush1.xpose.msra.mxu0 0.0
    %263 = vmatprep.subr.mxu0 0.0
    %264 = vmatpush1.xpose.msra.mxu0 0.0
    %265 = vmatprep.subr.mxu0 0.0
    %266 = vmatpush1.xpose.msra.mxu0 0.0
    %267 = vmatprep.subr.mxu0 0.0
    %268 = vmatpush1.xpose.msra.mxu0 0.0
    %269 = vmatprep.subr.mxu0 0.0
    %270 = vmatpush1.xpose.msra.mxu0 0.0
    %271 = vmatprep.subr.mxu0 0.0
    %272 = vmatpush1.xpose.msra.mxu0 0.0
    %273 = vmatprep.subr.mxu0 0.0
    %274 = vmatpush1.xpose.msra.mxu0 0.0
    %275 = vmatprep.subr.mxu0 0.0
    %276 = vmatpush1.xpose.msra.mxu0 0.0
    %277 = vmatprep.subr.mxu0 0.0
    %278 = vmatpush1.xpose.msra.mxu0 0.0
    %279 = vmatprep.subr.mxu0 0.0
    %280 = vmatpush1.xpose.msra.mxu0 0.0
    %281 = vmatprep.subr.mxu0 0.0
    %282 = vmatpush1.xpose.msra.mxu0 0.0
    %283 = vmatprep.subr.mxu0 0.0
    %284 = vmatpush1.xpose.msra.mxu0 0.0
    %285 = vmatprep.subr.mxu0 0.0
    %286 = vmatpush1.xpose.msra.mxu0 0.0
    %287 = vmatprep.subr.mxu0 0.0
    %288 = vmatpush1.xpose.msra.mxu0 0.0
    %289 = vmatprep.subr.mxu0 0.0
    %290 = vmatpush1.xpose.msra.mxu0 0.0
    %291 = vmatprep.subr.mxu0 0.0
    %292 = vmatpush1.xpose.msra.mxu0 0.0
    %293 = vmatprep.subr.mxu0 0.0
    %294 = vmatpush1.xpose.msra.mxu0 0.0
    %295 = vmatprep.subr.mxu0 0.0
    %296 = vmatpush1.xpose.msra.mxu0 0.0
    %297 = vmatprep.mubr.f32.mxu0 0.0
    %298 = vmatmul.mubr.f32.gmra.mrb[0].mxu0 %v148
    %v299 = vpop.f32.mrb[0].mxu0
    %v300 = vadd.f32 0.0, %v299
    %v301 = vpop.f32.mrb[0].mxu0
    %302 = vdwg.mxu0
    %303 = vmatprep.subr.mxu0 0.0
    %304 = vmatpush1.xpose.msra.mxu0 %v156
    %305 = vmatprep.subr.mxu0 0.0
    %306 = vmatpush1.xpose.msra.mxu0 0.0
    %307 = vmatprep.subr.mxu0 0.0
    %308 = vmatpush1.xpose.msra.mxu0 0.0
    %309 = vmatprep.subr.mxu0 0.0
    %310 = vmatpush1.xpose.msra.mxu0 0.0
    %311 = vmatprep.subr.mxu0 0.0
    %312 = vmatpush1.xpose.msra.mxu0 0.0
    %313 = vmatprep.subr.mxu0 0.0
    %314 = vmatpush1.xpose.msra.mxu0 0.0
    %315 = vmatprep.subr.mxu0 0.0
    %316 = vmatpush1.xpose.msra.mxu0 0.0
    %317 = vmatprep.subr.mxu0 0.0
    %318 = vmatpush1.xpose.msra.mxu0 0.0
    %319 = vmatprep.subr.mxu0 0.0
    %320 = vmatpush1.xpose.msra.mxu0 0.0
    %321 = vmatprep.subr.mxu0 0.0
    %322 = vmatpush1.xpose.msra.mxu0 0.0
    %323 = vmatprep.subr.mxu0 0.0
    %324 = vmatpush1.xpose.msra.mxu0 0.0
    %325 = vmatprep.subr.mxu0 0.0
    %326 = vmatpush1.xpose.msra.mxu0 0.0
    %327 = vmatprep.subr.mxu0 0.0
    %328 = vmatpush1.xpose.msra.mxu0 0.0
    %329 = vmatprep.subr.mxu0 0.0
    %330 = vmatpush1.xpose.msra.mxu0 0.0
    %331 = vmatprep.subr.mxu0 0.0
    %332 = vmatpush1.xpose.msra.mxu0 0.0
    %333 = vmatprep.subr.mxu0 0.0
    %334 = vmatpush1.xpose.msra.mxu0 0.0
    %335 = vmatprep.subr.mxu0 0.0
    %336 = vmatpush1.xpose.msra.mxu0 0.0
    %337 = vmatprep.subr.mxu0 0.0
    %338 = vmatpush1.xpose.msra.mxu0 0.0
    %339 = vmatprep.subr.mxu0 0.0
    %340 = vmatpush1.xpose.msra.mxu0 0.0
    %341 = vmatprep.subr.mxu0 0.0
    %342 = vmatpush1.xpose.msra.mxu0 0.0
    %343 = vmatprep.subr.mxu0 0.0
    %344 = vmatpush1.xpose.msra.mxu0 0.0
    %345 = vmatprep.subr.mxu0 0.0
    %346 = vmatpush1.xpose.msra.mxu0 0.0
    %347 = vmatprep.subr.mxu0 0.0
    %348 = vmatpush1.xpose.msra.mxu0 0.0
    %349 = vmatprep.subr.mxu0 0.0
    %350 = vmatpush1.xpose.msra.mxu0 0.0
    %351 = vmatprep.subr.mxu0 0.0
    %352 = vmatpush1.xpose.msra.mxu0 0.0
    %353 = vmatprep.subr.mxu0 0.0
    %354 = vmatpush1.xpose.msra.mxu0 0.0
    %355 = vmatprep.subr.mxu0 0.0
    %356 = vmatpush1.xpose.msra.mxu0 0.0
    %357 = vmatprep.subr.mxu0 0.0
    %358 = vmatpush1.xpose.msra.mxu0 0.0
    %359 = vmatprep.subr.mxu0 0.0
    %360 = vmatpush1.xpose.msra.mxu0 0.0
    %361 = vmatprep.subr.mxu0 0.0
    %362 = vmatpush1.xpose.msra.mxu0 0.0
    %363 = vmatprep.subr.mxu0 0.0
    %364 = vmatpush1.xpose.msra.mxu0 0.0
    %365 = vmatprep.subr.mxu0 0.0
    %366 = vmatpush1.xpose.msra.mxu0 0.0
    %367 = vmatprep.mubr.f32.mxu0 0.0
    %368 = vmatmul.mubr.f32.gmra.mrb[0].mxu0 %v154
    %v369 = vpop.f32.mrb[0].mxu0
    %v370 = vadd.f32 0.0, %v369
    %v371 = vpop.f32.mrb[0].mxu0
    %372 = vdwg.mxu0
    %vm373 = vcmask 64512
    %v374 = vsel %vm373, %v300, -inf
    %375 = vmax.xlane.f32.xlu0 %v374
    %v376 = vpop.xlane.xlu0 %375
    %v377 = vsel %vm373, %v370, -inf
    %378 = vmax.xlane.f32.xlu0 %v377
    %v379 = vpop.xlane.xlu0 %378
    %v380 = vsub.f32 %v300, %v376
    %v381 = vsub.f32 %v370, %v379
    %v382 = vmul.f32 %v380, 1.442695
    %v383 = vpow.pop %v382
    %v384 = vmul.f32 %v381, 1.442695
    %v385 = vpow.pop %v384
    %v386 = vsel %vm373, %v383, 0.0
    %387 = vadd.xlane.f32.xlu0 %v386
    %v388 = vpop.xlane.xlu0 %387
    %v389 = vsel %vm373, %v385, 0.0
    %390 = vadd.xlane.f32.xlu0 %v389
    %v391 = vpop.xlane.xlu0 %390
    %v392 = vrcp.pop %v388
    %v393 = vrcp.pop %v391
    %v394 = vmul.f32 %v383, %v392
    %v395 = vmul.f32 %v385, %v393
    %v397 = vsel %vm373, %v394, 0
    %399 = vmatprep.subr.mxu0 0.0
    %400 = vmatpush1.msra.mxu0 %v225
    %401 = vmatprep.subr.mxu0 0.0
    %402 = vmatpush1.msra.mxu0 0.0
    %403 = vmatprep.subr.mxu0 0.0
    %404 = vmatpush1.msra.mxu0 0.0
    %405 = vmatprep.subr.mxu0 0.0
    %406 = vmatpush1.msra.mxu0 0.0
    %407 = vmatprep.subr.mxu0 0.0
    %408 = vmatpush1.msra.mxu0 0.0
    %409 = vmatprep.subr.mxu0 0.0
    %410 = vmatpush1.msra.mxu0 0.0
    %411 = vmatprep.subr.mxu0 0.0
    %412 = vmatpush1.msra.mxu0 0.0
    %413 = vmatprep.subr.mxu0 0.0
    %414 = vmatpush1.msra.mxu0 0.0
    %415 = vmatprep.subr.mxu0 0.0
    %416 = vmatpush1.msra.mxu0 0.0
    %417 = vmatprep.subr.mxu0 0.0
    %418 = vmatpush1.msra.mxu0 0.0
    %419 = vmatprep.subr.mxu0 0.0
    %420 = vmatpush1.msra.mxu0 0.0
    %421 = vmatprep.subr.mxu0 0.0
    %422 = vmatpush1.msra.mxu0 0.0
    %423 = vmatprep.subr.mxu0 0.0
    %424 = vmatpush1.msra.mxu0 0.0
    %425 = vmatprep.subr.mxu0 0.0
    %426 = vmatpush1.msra.mxu0 0.0
    %427 = vmatprep.subr.mxu0 0.0
    %428 = vmatpush1.msra.mxu0 0.0
    %429 = vmatprep.subr.mxu0 0.0
    %430 = vmatpush1.msra.mxu0 0.0
    %431 = vmatprep.subr.mxu0 0.0
    %432 = vmatpush1.msra.mxu0 0.0
    %433 = vmatprep.subr.mxu0 0.0
    %434 = vmatpush1.msra.mxu0 0.0
    %435 = vmatprep.subr.mxu0 0.0
    %436 = vmatpush1.msra.mxu0 0.0
    %437 = vmatprep.subr.mxu0 0.0
    %438 = vmatpush1.msra.mxu0 0.0
    %439 = vmatprep.subr.mxu0 0.0
    %440 = vmatpush1.msra.mxu0 0.0
    %441 = vmatprep.subr.mxu0 0.0
    %442 = vmatpush1.msra.mxu0 0.0
    %443 = vmatprep.subr.mxu0 0.0
    %444 = vmatpush1.msra.mxu0 0.0
    %445 = vmatprep.subr.mxu0 0.0
    %446 = vmatpush1.msra.mxu0 0.0
    %447 = vmatprep.subr.mxu0 0.0
    %448 = vmatpush1.msra.mxu0 0.0
    %449 = vmatprep.subr.mxu0 0.0
    %450 = vmatpush1.msra.mxu0 0.0
    %451 = vmatprep.subr.mxu0 0.0
    %452 = vmatpush1.msra.mxu0 0.0
    %453 = vmatprep.subr.mxu0 0.0
    %454 = vmatpush1.msra.mxu0 0.0
    %455 = vmatprep.subr.mxu0 0.0
    %456 = vmatpush1.msra.mxu0 0.0
    %457 = vmatprep.subr.mxu0 0.0
    %458 = vmatpush1.msra.mxu0 0.0
    %459 = vmatprep.subr.mxu0 0.0
    %460 = vmatpush1.msra.mxu0 0.0
    %461 = vmatprep.subr.mxu0 0.0
    %462 = vmatpush1.msra.mxu0 0.0
    %463 = vmatprep.mubr.f32.mxu0 0.0
    %464 = vmatmul.mubr.f32.gmra.mrb[0].mxu0 %v397
    %v465 = vpop.f32.mrb[0].mxu0
    %v466 = vadd.f32 0.0, %v465
    %v467 = vpop.f32.mrb[0].mxu0
    %468 = vdwg.mxu0
    %v470 = vsel %vm373, %v395, 0
    %472 = vmatprep.subr.mxu0 0.0
    %473 = vmatpush1.msra.mxu0 %v230
    %474 = vmatprep.subr.mxu0 0.0
    %475 = vmatpush1.msra.mxu0 0.0
    %476 = vmatprep.subr.mxu0 0.0
    %477 = vmatpush1.msra.mxu0 0.0
    %478 = vmatprep.subr.mxu0 0.0
    %479 = vmatpush1.msra.mxu0 0.0
    %480 = vmatprep.subr.mxu0 0.0
    %481 = vmatpush1.msra.mxu0 0.0
    %482 = vmatprep.subr.mxu0 0.0
    %483 = vmatpush1.msra.mxu0 0.0
    %484 = vmatprep.subr.mxu0 0.0
    %485 = vmatpush1.msra.mxu0 0.0
    %486 = vmatprep.subr.mxu0 0.0
    %487 = vmatpush1.msra.mxu0 0.0
    %488 = vmatprep.subr.mxu0 0.0
    %489 = vmatpush1.msra.mxu0 0.0
    %490 = vmatprep.subr.mxu0 0.0
    %491 = vmatpush1.msra.mxu0 0.0
    %492 = vmatprep.subr.mxu0 0.0
    %493 = vmatpush1.msra.mxu0 0.0
    %494 = vmatprep.subr.mxu0 0.0
    %495 = vmatpush1.msra.mxu0 0.0
    %496 = vmatprep.subr.mxu0 0.0
    %497 = vmatpush1.msra.mxu0 0.0
    %498 = vmatprep.subr.mxu0 0.0
    %499 = vmatpush1.msra.mxu0 0.0
    %500 = vmatprep.subr.mxu0 0.0
    %501 = vmatpush1.msra.mxu0 0.0
    %502 = vmatprep.subr.mxu0 0.0
    %503 = vmatpush1.msra.mxu0 0.0
    %504 = vmatprep.subr.mxu0 0.0
    %505 = vmatpush1.msra.mxu0 0.0
    %506 = vmatprep.subr.mxu0 0.0
    %507 = vmatpush1.msra.mxu0 0.0
    %508 = vmatprep.subr.mxu0 0.0
    %509 = vmatpush1.msra.mxu0 0.0
    %510 = vmatprep.subr.mxu0 0.0
    %511 = vmatpush1.msra.mxu0 0.0
    %512 = vmatprep.subr.mxu0 0.0
    %513 = vmatpush1.msra.mxu0 0.0
    %514 = vmatprep.subr.mxu0 0.0
    %515 = vmatpush1.msra.mxu0 0.0
    %516 = vmatprep.subr.mxu0 0.0
    %517 = vmatpush1.msra.mxu0 0.0
    %518 = vmatprep.subr.mxu0 0.0
    %519 = vmatpush1.msra.mxu0 0.0
    %520 = vmatprep.subr.mxu0 0.0
    %521 = vmatpush1.msra.mxu0 0.0
    %522 = vmatprep.subr.mxu0 0.0
    %523 = vmatpush1.msra.mxu0 0.0
    %524 = vmatprep.subr.mxu0 0.0
    %525 = vmatpush1.msra.mxu0 0.0
    %526 = vmatprep.subr.mxu0 0.0
    %527 = vmatpush1.msra.mxu0 0.0
    %528 = vmatprep.subr.mxu0 0.0
    %529 = vmatpush1.msra.mxu0 0.0
    %530 = vmatprep.subr.mxu0 0.0
    %531 = vmatpush1.msra.mxu0 0.0
    %532 = vmatprep.subr.mxu0 0.0
    %533 = vmatpush1.msra.mxu0 0.0
    %534 = vmatprep.subr.mxu0 0.0
    %535 = vmatpush1.msra.mxu0 0.0
    %536 = vmatprep.mubr.f32.mxu0 0.0
    %537 = vmatmul.mubr.f32.gmra.mrb[0].mxu0 %v470
    %v538 = vpop.f32.mrb[0].mxu0
    %v539 = vadd.f32 0.0, %v538
    %v540 = vpop.f32.mrb[0].mxu0
    %541 = vdwg.mxu0
    %542 = vst [vmem:[#allocation7] sm:$0xff] %v466
    %543 = vst [vmem:[#allocation7 + $0x8] sm:$0xff] %v539
    // Predicated region
    $region22: #{tpu_custom_call.1} parent=1 // pred_check
      _
    $region23: #{tpu_custom_call.1} parent=1 // pred_check_branch
      %545 = sbr.rel (0) target = $region25
    $region24: #{tpu_custom_call.1} parent=1 // pred_region
      %s547 = ssub.s32 256, 256
      %548 = vsyncadd [#allocation4], %s547
      %s549 = sshll.u32 [#allocation7], 4
      %s550 = int_to_ptr.vmem [resolvable:$true] %s549
      %555 = dma.vmem_to_hbm [thread:$0]  %s550, 256, %s3, [#allocation4], 128, 128, 8
    $region25: #{tpu_custom_call.1} parent=1 // pred_fallthru
      _
    // Predicated region
    $region26: #{tpu_custom_call.1} parent=1 // pred_check
      _
    $region27: #{tpu_custom_call.1} parent=1 // pred_check_branch
      %557 = sbr.rel (0) target = $region29
    $region28: #{tpu_custom_call.1} parent=1 // pred_region
      %558 = dma.done [#allocation4], 256
    $region29: #{tpu_custom_call.1} parent=1 // pred_fallthru
      _
    %559 = vsyncpa [#allocation3], 1
    %560 = vsyncpa [#allocation6], 1
    %561 = vsyncpa [#allocation4], 1

</llo_original>
